<compile_context>
chip_gen: v7x
topology: tpu7x:2x2x1
jax: 0.10.0
libtpu: 0.0.40
codegen_flags: <defaults>
</compile_context>

<pallas_src>
import jax
import jax.numpy as jnp
from jax.experimental import pallas as pl
from jax.experimental.pallas import tpu as pltpu

SCALE = 0.5            # the `scale` argument of Scale(...)
LN_EPS = 1e-5          # torch.nn.LayerNorm default eps
MXU_DTYPE = jnp.bfloat16


def _round_up(x, m):
    return ((x + m - 1) // m) * m


def _tpu_kind():
    try:
        return jax.devices()[0].device_kind.lower()
    except Exception:
        return ""


def _vmem_limit_bytes():
    kind = _tpu_kind()
    if "v7" in kind:
        return 56 * 1024 * 1024      # 64 MiB physical per TC; leave headroom
    if "v5" in kind or "v6" in kind:
        return 96 * 1024 * 1024      # 128 MiB physical VMEM
    return 48 * 1024 * 1024          # conservative for unknown generations


def _default_block_rows():
    kind = _tpu_kind()
    if "v5" in kind or "v6" in kind:
        return 1024                  # amortize per-grid-step overhead
    return 512                       # v7x (64 MiB VMEM) and others


# --------------------------------------------------------------------------
# Kernel: fused LayerNorm -> Linear -> SiLU -> Linear (Scale already folded
# into the second projection's weights/bias at prep time).
# --------------------------------------------------------------------------
def _scale_ff_kernel(x_ref, g_ref, beta_ref, w1_ref, b1_ref, w2_ref, b2_ref,
                     o_ref):
    # x_ref: (TM, D) tile of rows (batch*seq collapsed).
    x = x_ref[...].astype(jnp.float32)

    # --- LayerNorm over the last dim (centered two-pass variance, f32) ---
    mu = jnp.mean(x, axis=-1, keepdims=True)
    xc = x - mu
    var = jnp.mean(xc * xc, axis=-1, keepdims=True)
    inv = jax.lax.rsqrt(var + LN_EPS)
    xn = xc * inv * g_ref[...] + beta_ref[...]             # (TM, D) f32

    # --- Linear(dim -> dim*mult): bf16 MXU operands, f32 accumulation ---
    h = jnp.dot(xn.astype(MXU_DTYPE), w1_ref[...],
                preferred_element_type=jnp.float32)
    h = h + b1_ref[...]

    # --- SiLU / Swish: one EUP op/elem (sigmoid(h) = 0.5*(1+tanh(0.5 h))) ---
    h = h * (0.5 * (jnp.tanh(0.5 * h) + 1.0))

    # --- Linear(dim*mult -> dim): bf16 MXU, f32 acc.  Scale(0.5) is already
    #     folded into w2/b2, so no epilogue multiply. ---
    y = jnp.dot(h.astype(MXU_DTYPE), w2_ref[...],
                preferred_element_type=jnp.float32)
    y = y + b2_ref[...]

    o_ref[...] = y.astype(o_ref.dtype)


# --------------------------------------------------------------------------
# One-time parameter preparation (do at model init / weight load, NOT per
# call): bf16 casts for the MXU, 2-D reshapes, and Scale(0.5) folded into the
# second projection.
# --------------------------------------------------------------------------
def prepare_scale_ff_params(gamma, beta, w1, b1, w2, b2, scale=SCALE):
    D, H = w1.shape
    return dict(
        gamma=gamma.reshape(1, D).astype(jnp.float32),
        beta=beta.reshape(1, D).astype(jnp.float32),
        w1=w1.astype(MXU_DTYPE),
        b1=b1.reshape(1, H).astype(jnp.float32),
        w2=(w2 * scale).astype(MXU_DTYPE),           # fold scale (exact in bf16)
        b2=(b2 * scale).reshape(1, D).astype(jnp.float32),
    )


def scale_feedforward(x, params, *, block_rows=None):
    """Scale(0.5, FeedForward)(x) fused in one pallas_call.

    x: (B, T, D); params: output of prepare_scale_ff_params.
    """
    B, T, D = x.shape
    H = params["w1"].shape[1]
    N = B * T

    # Collapse batch/seq into rows; no host-side padding (Pallas masks the
    # partial tail block on writeback; rows are independent in LN/FF).
    x2 = x.reshape(N, D)
    sub = 16 if x.dtype == jnp.bfloat16 else 8       # sublane packing rule
    if block_rows is None:
        block_rows = _default_block_rows()
    tm = min(block_rows, _round_up(N, sub))
    grid = pl.cdiv(N, tm)

    const = lambda i: (0, 0)
    # Constant-index operands: fetched once, single-buffered (halves weight VMEM).
    resident = lambda shape: pl.BlockSpec(shape, const,
                                          pipeline_mode=pl.Buffered(1))

    out = pl.pallas_call(
        _scale_ff_kernel,
        out_shape=jax.ShapeDtypeStruct((N, D), x.dtype),
        grid_spec=pltpu.PrefetchScalarGridSpec(
            num_scalar_prefetch=0,
            grid=(grid,),
            in_specs=[
                pl.BlockSpec((tm, D), lambda i: (i, 0)),    # x rows (pipelined)
                resident((1, D)),                           # gamma
                resident((1, D)),                           # beta
                resident((D, H)),                           # w1 (bf16)
                resident((1, H)),                           # b1
                resident((H, D)),                           # w2 (bf16, * scale)
                resident((1, D)),                           # b2 (* scale)
            ],
            out_specs=pl.BlockSpec((tm, D), lambda i: (i, 0)),
        ),
        compiler_params=pltpu.CompilerParams(
            dimension_semantics=("parallel",),
            vmem_limit_bytes=_vmem_limit_bytes(),
        ),
    )(x2, params["gamma"], params["beta"], params["w1"], params["b1"],
      params["w2"], params["b2"])

    return out.reshape(B, T, D)


def _reference(x, gamma, beta, w1, b1, w2, b2):
    """Pure-JAX reference using the same bf16-MXU / f32-accumulate recipe."""
    xf = x.astype(jnp.float32)
    mu = jnp.mean(xf, axis=-1, keepdims=True)
    xc = xf - mu
    var = jnp.mean(xc * xc, axis=-1, keepdims=True)
    xn = xc * jax.lax.rsqrt(var + LN_EPS) * gamma + beta
    h = jnp.dot(xn.astype(MXU_DTYPE), w1.astype(MXU_DTYPE),
                preferred_element_type=jnp.float32) + b1
    h = h * jax.nn.sigmoid(h)
    y = jnp.dot(h.astype(MXU_DTYPE), w2.astype(MXU_DTYPE),
                preferred_element_type=jnp.float32) + b2
    return (y * SCALE).astype(x.dtype)


if __name__ == "__main__":
    key = jax.random.PRNGKey(0)
    B, T, D, MULT = 2, 8, 32, 4       # small test shapes (real conformer: D=512, H=2048)
    H = D * MULT

    kx, kg, kb, k1, k1b, k2, k2b = jax.random.split(key, 7)
    x = jax.random.normal(kx, (B, T, D), dtype=jnp.float32)
    gamma = jnp.ones((D,), jnp.float32)
    beta = jnp.zeros((D,), jnp.float32)
    w1 = jax.random.normal(k1, (D, H), jnp.float32) * 0.05
    b1 = jax.random.normal(k1b, (H,), jnp.float32) * 0.01
    w2 = jax.random.normal(k2, (H, D), jnp.float32) * 0.05
    b2 = jax.random.normal(k2b, (D,), jnp.float32) * 0.01

    # One-time prep (init-time), then the fused call.
    params = prepare_scale_ff_params(gamma, beta, w1, b1, w2, b2)
    out = scale_feedforward(x, params)
    out = jax.block_until_ready(out)

    ref = _reference(x, gamma, beta, w1, b1, w2, b2)
    assert out.shape == (B, T, D)
    assert jnp.allclose(out, ref, atol=2e-3, rtol=2e-3), "mismatch vs reference"

    print("KERNEL_OK")
</pallas_src>

<mosaic_0001>
module attributes {stable_mosaic.version = 11 : i64} {
  func.func @_scale_ff_kernel(%arg0: i32, %arg1: memref<16x32xf32, #tpu.memory_space<vmem>>, %arg2: memref<1x32xf32, #tpu.memory_space<vmem>>, %arg3: memref<1x32xf32, #tpu.memory_space<vmem>>, %arg4: memref<32x128xbf16, #tpu.memory_space<vmem>>, %arg5: memref<1x128xf32, #tpu.memory_space<vmem>>, %arg6: memref<128x32xbf16, #tpu.memory_space<vmem>>, %arg7: memref<1x32xf32, #tpu.memory_space<vmem>>, %arg8: memref<16x32xf32, #tpu.memory_space<vmem>>) attributes {dimension_semantics = [#tpu.dimension_semantics<parallel>], iteration_bounds = array<i64: 1>, scalar_prefetch = 0 : i64, scratch_operands = 0 : i64, tpu.core_type = #tpu.core_type<tc>, window_params = [{transform_indices = @transform_0, window_bounds = array<i64: 16, 32>}, {pipeline_mode = #tpu.pipeline_mode<synchronous>, transform_indices = @transform_1, window_bounds = array<i64: 1, 32>}, {pipeline_mode = #tpu.pipeline_mode<synchronous>, transform_indices = @transform_2, window_bounds = array<i64: 1, 32>}, {pipeline_mode = #tpu.pipeline_mode<synchronous>, transform_indices = @transform_3, window_bounds = array<i64: 32, 128>}, {pipeline_mode = #tpu.pipeline_mode<synchronous>, transform_indices = @transform_4, window_bounds = array<i64: 1, 128>}, {pipeline_mode = #tpu.pipeline_mode<synchronous>, transform_indices = @transform_5, window_bounds = array<i64: 128, 32>}, {pipeline_mode = #tpu.pipeline_mode<synchronous>, transform_indices = @transform_6, window_bounds = array<i64: 1, 32>}, {transform_indices = @transform_7, window_bounds = array<i64: 16, 32>}]} {
    %c0 = arith.constant 0 : index
    %c0_0 = arith.constant 0 : index
    %0 = vector.load %arg1[%c0, %c0_0] : memref<16x32xf32, #tpu.memory_space<vmem>>, vector<16x32xf32>
    %cst = arith.constant dense<0.000000e+00> : vector<16xf32>
    %1 = vector.multi_reduction <add>, %0, %cst [1] : vector<16x32xf32> to vector<16xf32>
    %2 = vector.shape_cast %1 : vector<16xf32> to vector<16x1xf32>
    %cst_1 = arith.constant 3.200000e+01 : f32
    %3 = vector.broadcast %cst_1 : f32 to vector<16x1xf32>
    %4 = arith.divf %2, %3 : vector<16x1xf32>
    %5 = vector.broadcast %4 : vector<16x1xf32> to vector<16x32xf32>
    %6 = arith.subf %0, %5 : vector<16x32xf32>
    %7 = arith.mulf %6, %6 : vector<16x32xf32>
    %cst_2 = arith.constant dense<0.000000e+00> : vector<16xf32>
    %8 = vector.multi_reduction <add>, %7, %cst_2 [1] : vector<16x32xf32> to vector<16xf32>
    %9 = vector.shape_cast %8 : vector<16xf32> to vector<16x1xf32>
    %cst_3 = arith.constant 3.200000e+01 : f32
    %10 = vector.broadcast %cst_3 : f32 to vector<16x1xf32>
    %11 = arith.divf %9, %10 : vector<16x1xf32>
    %cst_4 = arith.constant 9.99999974E-6 : f32
    %12 = vector.broadcast %cst_4 : f32 to vector<16x1xf32>
    %13 = arith.addf %11, %12 : vector<16x1xf32>
    %14 = math.rsqrt %13 : vector<16x1xf32>
    %15 = vector.broadcast %14 : vector<16x1xf32> to vector<16x32xf32>
    %16 = arith.mulf %6, %15 : vector<16x32xf32>
    %c0_5 = arith.constant 0 : index
    %c0_6 = arith.constant 0 : index
    %17 = vector.load %arg2[%c0_5, %c0_6] : memref<1x32xf32, #tpu.memory_space<vmem>>, vector<1x32xf32>
    %18 = vector.broadcast %17 : vector<1x32xf32> to vector<16x32xf32>
    %19 = arith.mulf %16, %18 : vector<16x32xf32>
    %c0_7 = arith.constant 0 : index
    %c0_8 = arith.constant 0 : index
    %20 = vector.load %arg3[%c0_7, %c0_8] : memref<1x32xf32, #tpu.memory_space<vmem>>, vector<1x32xf32>
    %21 = vector.broadcast %20 : vector<1x32xf32> to vector<16x32xf32>
    %22 = arith.addf %19, %21 : vector<16x32xf32>
    %23 = arith.truncf %22 : vector<16x32xf32> to vector<16x32xbf16>
    %c0_9 = arith.constant 0 : index
    %c0_10 = arith.constant 0 : index
    %24 = vector.load %arg4[%c0_9, %c0_10] : memref<32x128xbf16, #tpu.memory_space<vmem>>, vector<32x128xbf16>
    %cst_11 = arith.constant dense<0.000000e+00> : vector<16x128xf32>
    %25 = tpu.matmul %23, %24, %cst_11 {dimension_numbers = #tpu.dot_dimension_numbers<[1], [0], [0], [1], [0, 0, 1, 1], [], []>} : vector<16x32xbf16>, vector<32x128xbf16>, vector<16x128xf32> -> vector<16x128xf32>
    %c0_12 = arith.constant 0 : index
    %c0_13 = arith.constant 0 : index
    %26 = vector.load %arg5[%c0_12, %c0_13] : memref<1x128xf32, #tpu.memory_space<vmem>>, vector<1x128xf32>
    %27 = vector.broadcast %26 : vector<1x128xf32> to vector<16x128xf32>
    %28 = arith.addf %25, %27 : vector<16x128xf32>
    %cst_14 = arith.constant 5.000000e-01 : f32
    %29 = vector.broadcast %cst_14 : f32 to vector<16x128xf32>
    %30 = arith.mulf %29, %28 : vector<16x128xf32>
    %31 = math.tanh %30 : vector<16x128xf32>
    %cst_15 = arith.constant 1.000000e+00 : f32
    %32 = vector.broadcast %cst_15 : f32 to vector<16x128xf32>
    %33 = arith.addf %31, %32 : vector<16x128xf32>
    %cst_16 = arith.constant 5.000000e-01 : f32
    %34 = vector.broadcast %cst_16 : f32 to vector<16x128xf32>
    %35 = arith.mulf %34, %33 : vector<16x128xf32>
    %36 = arith.mulf %28, %35 : vector<16x128xf32>
    %37 = arith.truncf %36 : vector<16x128xf32> to vector<16x128xbf16>
    %c0_17 = arith.constant 0 : index
    %c0_18 = arith.constant 0 : index
    %38 = vector.load %arg6[%c0_17, %c0_18] : memref<128x32xbf16, #tpu.memory_space<vmem>>, vector<128x32xbf16>
    %cst_19 = arith.constant dense<0.000000e+00> : vector<16x32xf32>
    %39 = tpu.matmul %37, %38, %cst_19 {dimension_numbers = #tpu.dot_dimension_numbers<[1], [0], [0], [1], [0, 0, 1, 1], [], []>} : vector<16x128xbf16>, vector<128x32xbf16>, vector<16x32xf32> -> vector<16x32xf32>
    %c0_20 = arith.constant 0 : index
    %c0_21 = arith.constant 0 : index
    %40 = vector.load %arg7[%c0_20, %c0_21] : memref<1x32xf32, #tpu.memory_space<vmem>>, vector<1x32xf32>
    %41 = vector.broadcast %40 : vector<1x32xf32> to vector<16x32xf32>
    %42 = arith.addf %39, %41 : vector<16x32xf32>
    %c0_22 = arith.constant 0 : index
    %c0_23 = arith.constant 0 : index
    %43 = vector.load %arg8[%c0_22, %c0_23] : memref<16x32xf32, #tpu.memory_space<vmem>>, vector<16x32xf32>
    tpu.vector_store %arg8[%c0_22, %c0_23], %42 {strides = array<i32>} : memref<16x32xf32, #tpu.memory_space<vmem>>, vector<16x32xf32>,
    return
  }
  func.func @transform_0(%arg0: i32) -> (i32, i32) {
    %c0_i32 = arith.constant 0 : i32
    %c0_i32_0 = arith.constant 0 : i32
    return %arg0, %c0_i32 : i32, i32
  }
  func.func @transform_1(%arg0: i32) -> (i32, i32) {
    %c0_i32 = arith.constant 0 : i32
    %c0_i32_0 = arith.constant 0 : i32
    %c0_i32_1 = arith.constant 0 : i32
    return %c0_i32, %c0_i32_0 : i32, i32
  }
  func.func @transform_2(%arg0: i32) -> (i32, i32) {
    %c0_i32 = arith.constant 0 : i32
    %c0_i32_0 = arith.constant 0 : i32
    %c0_i32_1 = arith.constant 0 : i32
    return %c0_i32, %c0_i32_0 : i32, i32
  }
  func.func @transform_3(%arg0: i32) -> (i32, i32) {
    %c0_i32 = arith.constant 0 : i32
    %c0_i32_0 = arith.constant 0 : i32
    %c0_i32_1 = arith.constant 0 : i32
    return %c0_i32, %c0_i32_0 : i32, i32
  }
  func.func @transform_4(%arg0: i32) -> (i32, i32) {
    %c0_i32 = arith.constant 0 : i32
    %c0_i32_0 = arith.constant 0 : i32
    %c0_i32_1 = arith.constant 0 : i32
    return %c0_i32, %c0_i32_0 : i32, i32
  }
  func.func @transform_5(%arg0: i32) -> (i32, i32) {
    %c0_i32 = arith.constant 0 : i32
    %c0_i32_0 = arith.constant 0 : i32
    %c0_i32_1 = arith.constant 0 : i32
    return %c0_i32, %c0_i32_0 : i32, i32
  }
  func.func @transform_6(%arg0: i32) -> (i32, i32) {
    %c0_i32 = arith.constant 0 : i32
    %c0_i32_0 = arith.constant 0 : i32
    %c0_i32_1 = arith.constant 0 : i32
    return %c0_i32, %c0_i32_0 : i32, i32
  }
  func.func @transform_7(%arg0: i32) -> (i32, i32) {
    %c0_i32 = arith.constant 0 : i32
    %c0_i32_0 = arith.constant 0 : i32
    return %arg0, %c0_i32 : i32, i32
  }
}

</mosaic_0001>

<llo_original>
// kernel: tpu_custom_call.1
$region0: #{tpu_custom_call.1}
  #allocation0 [shape = 'u32[]', space=smem, size = 0x4, offset = 0x4, fixed_abs, tag = 'smem constant byte address 0x4 - core index']
  #allocation1 [shape = 'u32[144,128]{1,0:T(1,128)}', space=vmem, size = 0x12000, scoped, tag = 'internal scratch']
  %s0 = inlined_call_operand.vmem [shape: f32[16,32], index: 0, kind: input, shape index: {}]
  %s1 = inlined_call_operand.vmem [shape: f32[1,32], index: 1, kind: input, shape index: {}]
  %s2 = inlined_call_operand.vmem [shape: f32[1,32], index: 2, kind: input, shape index: {}]
  %s3 = inlined_call_operand.vmem [shape: bf16[32,128], index: 3, kind: input, shape index: {}]
  %s4 = inlined_call_operand.vmem [shape: f32[1,128], index: 4, kind: input, shape index: {}]
  %s5 = inlined_call_operand.vmem [shape: bf16[128,32], index: 5, kind: input, shape index: {}]
  %s6 = inlined_call_operand.vmem [shape: f32[1,32], index: 6, kind: input, shape index: {}]
  %s7 = inlined_call_operand.hbm [shape: f32[16,32], index: 7, kind: output, shape index: {}]
  %s8 = sld [smem:[#allocation0]]
  $region38: #{tpu_custom_call.1} parent=0
    _
  %s10 = ssub.s32 1, %s8
  %s11 = scalar_select 0, %s10, %s8
  $region1: #{tpu_custom_call.1} parent=0
    #allocation2 [shape = 'u8[8192]{0}', space=vmem, size = 0x2000, scoped, tag = 'output window, operand 0, single buffered']
    #allocation3 [shape = 's32[1]{0}', space=sflag, size = 0x4, scoped, tag = 'scoped memory for tpu_custom_call.1']
    %12 = vsyncpa [#allocation3], 0
    // Predicated region
    $region2: #{tpu_custom_call.1} parent=1 // pred_check
      _
    $region3: #{tpu_custom_call.1} parent=1 // pred_check_branch
      %14 = sbr.rel (0) target = $region5
    $region4: #{tpu_custom_call.1} parent=1 // pred_region
      _
    $region5: #{tpu_custom_call.1} parent=1 // pred_fallthru
      _
    // Predicated region
    $region6: #{tpu_custom_call.1} parent=1 // pred_check
      _
    $region7: #{tpu_custom_call.1} parent=1 // pred_check_branch
      %16 = sbr.rel (0) target = $region9
    $region8: #{tpu_custom_call.1} parent=1 // pred_region
      _
    $region9: #{tpu_custom_call.1} parent=1 // pred_fallthru
      _
    // Predicated region
    $region10: #{tpu_custom_call.1} parent=1 // pred_check
      _
    $region11: #{tpu_custom_call.1} parent=1 // pred_check_branch
      %18 = sbr.rel (0) target = $region13
    $region12: #{tpu_custom_call.1} parent=1 // pred_region
      _
    $region13: #{tpu_custom_call.1} parent=1 // pred_fallthru
      _
    // Predicated region
    $region14: #{tpu_custom_call.1} parent=1 // pred_check
      _
    $region15: #{tpu_custom_call.1} parent=1 // pred_check_branch
      %20 = sbr.rel (0) target = $region17
    $region16: #{tpu_custom_call.1} parent=1 // pred_region
      _
    $region17: #{tpu_custom_call.1} parent=1 // pred_fallthru
      _
    // Predicated region
    $region18: #{tpu_custom_call.1} parent=1 // pred_check
      _
    $region19: #{tpu_custom_call.1} parent=1 // pred_check_branch
      %22 = sbr.rel (0) target = $region21
    $region20: #{tpu_custom_call.1} parent=1 // pred_region
      _
    $region21: #{tpu_custom_call.1} parent=1 // pred_fallthru
      _
    // Predicated region
    $region22: #{tpu_custom_call.1} parent=1 // pred_check
      _
    $region23: #{tpu_custom_call.1} parent=1 // pred_check_branch
      %24 = sbr.rel (0) target = $region25
    $region24: #{tpu_custom_call.1} parent=1 // pred_region
      _
    $region25: #{tpu_custom_call.1} parent=1 // pred_fallthru
      _
    // Predicated region
    $region26: #{tpu_custom_call.1} parent=1 // pred_check
      _
    $region27: #{tpu_custom_call.1} parent=1 // pred_check_branch
      %26 = sbr.rel (0) target = $region29
    $region28: #{tpu_custom_call.1} parent=1 // pred_region
      _
    $region29: #{tpu_custom_call.1} parent=1 // pred_fallthru
      _
    %v28 = vld [vmem:[%s0] sm:$0xff]
    %v29 = vld [vmem:[%s0 + $0x8] sm:$0xff]
    %vm30 = vcmask 261120
    %v31 = vsel %vm30, %v28, 0.0
    %32 = vadd.xlane.f32.xlu0 %v31
    %v33 = vpop.xlane.xlu0 %32
    %v34 = vsel %vm30, %v29, 0.0
    %35 = vadd.xlane.f32.xlu0 %v34
    %v36 = vpop.xlane.xlu0 %35
    %v37 = vrcp.pop 32.0
    %v38 = vmul.f32 %v33, %v37
    %v39 = vmul.f32 %v36, %v37
    %v40 = vsub.f32 %v28, %v38
    %v41 = vsub.f32 %v29, %v39
    %v42 = vmul.f32 %v40, %v40
    %v43 = vmul.f32 %v41, %v41
    %v44 = vsel %vm30, %v42, 0.0
    %45 = vadd.xlane.f32.xlu0 %v44
    %v46 = vpop.xlane.xlu0 %45
    %v47 = vsel %vm30, %v43, 0.0
    %48 = vadd.xlane.f32.xlu0 %v47
    %v49 = vpop.xlane.xlu0 %48
    %v50 = vmul.f32 %v46, %v37
    %v51 = vmul.f32 %v49, %v37
    %v52 = vadd.f32 %v50, 1e-05
    %v53 = vadd.f32 %v51, 1e-05
    %v54 = vrsqrt.pop %v52
    %v55 = vrsqrt.pop %v53
    %v56 = vmul.f32 %v40, %v54
    %v57 = vmul.f32 %v41, %v55
    %v58 = vld [vmem:[%s1] sm:$0x1]
    %v60 = vlaneseq
    %v61 = vshrl.u32 %v60, 7
    %v62 = vsub.s32 0, %v61
    %v63 = vrot.slane %v58, %v62
    %v65 = vmul.f32 %v56, %v63
    %v66 = vmul.f32 %v57, %v63
    %v67 = vld [vmem:[%s2] sm:$0x1]
    %v69 = vlaneseq
    %v70 = vshrl.u32 %v69, 7
    %v71 = vsub.s32 0, %v70
    %v72 = vrot.slane %v67, %v71
    %v74 = vadd.f32 %v65, %v72
    %v75 = vadd.f32 %v66, %v72
    %v76 = vpack.c.bf16 %v75, %v74
    %v77 = vld [vmem:[%s3] sm:$0xf]
    %v78 = vld [vmem:[%s3 + $0x4] sm:$0xf]
    %v79 = vld [vmem:[%s3 + $0x8] sm:$0xf]
    %v80 = vld [vmem:[%s3 + $0xc] sm:$0xf]
    %v81 = vld [vmem:[%s4] sm:$0x1]
    %v83 = vlaneseq
    %v84 = vshrl.u32 %v83, 7
    %v85 = vsub.s32 0, %v84
    %v86 = vrot.slane %v81, %v85
    %v92 = vunpack.c.l.b16 %v77
    %v93 = vunpack.c.l.b16 %v78
    %v94 = vunpack.c.l.b16 %v79
    %v95 = vunpack.c.l.b16 %v80
    %v96 = vpack.c.b16 %v93, %v92
    %v97 = vpack.c.b16 %v95, %v94
    %v101 = vsel %vm30, %v76, 0
    %103 = vmatprep.subr.bf16.mxu0 0
    %104 = vmatpush1.bf16.msra.mxu0 %v96
    %105 = vmatprep.subr.bf16.mxu0 0
    %106 = vmatpush1.bf16.msra.mxu0 %v97
    %107 = vmatprep.subr.bf16.mxu0 0
    %108 = vmatpush1.bf16.msra.mxu0 0
    %109 = vmatprep.subr.bf16.mxu0 0
    %110 = vmatpush1.bf16.msra.mxu0 0
    %111 = vmatprep.subr.bf16.mxu0 0
    %112 = vmatpush1.bf16.msra.mxu0 0
    %113 = vmatprep.subr.bf16.mxu0 0
    %114 = vmatpush1.bf16.msra.mxu0 0
    %115 = vmatprep.subr.bf16.mxu0 0
    %116 = vmatpush1.bf16.msra.mxu0 0
    %117 = vmatprep.subr.bf16.mxu0 0
    %118 = vmatpush1.bf16.msra.mxu0 0
    %119 = vmatprep.subr.bf16.mxu0 0
    %120 = vmatpush1.bf16.msra.mxu0 0
    %121 = vmatprep.subr.bf16.mxu0 0
    %122 = vmatpush1.bf16.msra.mxu0 0
    %123 = vmatprep.subr.bf16.mxu0 0
    %124 = vmatpush1.bf16.msra.mxu0 0
    %125 = vmatprep.subr.bf16.mxu0 0
    %126 = vmatpush1.bf16.msra.mxu0 0
    %127 = vmatprep.subr.bf16.mxu0 0
    %128 = vmatpush1.bf16.msra.mxu0 0
    %129 = vmatprep.subr.bf16.mxu0 0
    %130 = vmatpush1.bf16.msra.mxu0 0
    %131 = vmatprep.subr.bf16.mxu0 0
    %132 = vmatpush1.bf16.msra.mxu0 0
    %133 = vmatprep.subr.bf16.mxu0 0
    %134 = vmatpush1.bf16.msra.mxu0 0
    %135 = vmatprep.mubr.bf16.mxu0 0
    %136 = vmatmul.mubr.bf16.gmra.mrb[0].mxu0 %v101
    %v137 = vpop.f32.mrb[0].mxu0
    %v138 = vadd.f32 %v86, %v137
    %v139 = vpop.f32.mrb[0].mxu0
    %v140 = vpop.f32.mrb[0].mxu0
    %v141 = vadd.f32 %v86, %v140
    %v142 = vpop.f32.mrb[0].mxu0
    %143 = vdwg.mxu0
    %v144 = vmul.f32 %v138, 0.5
    %v145 = vmul.f32 %v141, 0.5
    %v146 = vtanh.pop %v144
    %v147 = vtanh.pop %v145
    %v148 = vadd.f32 %v146, 1.0
    %v149 = vadd.f32 %v147, 1.0
    %v150 = vmul.f32 %v148, 0.5
    %v151 = vmul.f32 %v149, 0.5
    %v152 = vmul.f32 %v138, %v150
    %v153 = vmul.f32 %v141, %v151
    %v154 = vpack.c.bf16 %v153, %v152
    %v155 = vld [vmem:[%s5] sm:$0xf]
    %v156 = vld [vmem:[%s5 + $0x4] sm:$0xf]
    %v157 = vld [vmem:[%s5 + $0x8] sm:$0xf]
    %v158 = vld [vmem:[%s5 + $0xc] sm:$0xf]
    %v159 = vld [vmem:[%s5 + $0x10] sm:$0xf]
    %v160 = vld [vmem:[%s5 + $0x14] sm:$0xf]
    %v161 = vld [vmem:[%s5 + $0x18] sm:$0xf]
    %v162 = vld [vmem:[%s5 + $0x1c] sm:$0xf]
    %v163 = vld [vmem:[%s5 + $0x20] sm:$0xf]
    %v164 = vld [vmem:[%s5 + $0x24] sm:$0xf]
    %v165 = vld [vmem:[%s5 + $0x28] sm:$0xf]
    %v166 = vld [vmem:[%s5 + $0x2c] sm:$0xf]
    %v167 = vld [vmem:[%s5 + $0x30] sm:$0xf]
    %v168 = vld [vmem:[%s5 + $0x34] sm:$0xf]
    %v169 = vld [vmem:[%s5 + $0x38] sm:$0xf]
    %v170 = vld [vmem:[%s5 + $0x3c] sm:$0xf]
    %v171 = vld [vmem:[%s6] sm:$0x1]
    %v173 = vlaneseq
    %v174 = vshrl.u32 %v173, 7
    %v175 = vsub.s32 0, %v174
    %v176 = vrot.slane %v171, %v175
    %v194 = vunpack.c.l.b16 %v155
    %v195 = vunpack.c.l.b16 %v156
    %v196 = vunpack.c.l.b16 %v157
    %v197 = vunpack.c.l.b16 %v158
    %v198 = vunpack.c.l.b16 %v159
    %v199 = vunpack.c.l.b16 %v160
    %v200 = vunpack.c.l.b16 %v161
    %v201 = vunpack.c.l.b16 %v162
    %v202 = vunpack.c.l.b16 %v163
    %v203 = vunpack.c.l.b16 %v164
    %v204 = vunpack.c.l.b16 %v165
    %v205 = vunpack.c.l.b16 %v166
    %v206 = vunpack.c.l.b16 %v167
    %v207 = vunpack.c.l.b16 %v168
    %v208 = vunpack.c.l.b16 %v169
    %v209 = vunpack.c.l.b16 %v170
    %v210 = vpack.c.b16 %v195, %v194
    %v211 = vpack.c.b16 %v197, %v196
    %v212 = vpack.c.b16 %v199, %v198
    %v213 = vpack.c.b16 %v201, %v200
    %v214 = vpack.c.b16 %v203, %v202
    %v215 = vpack.c.b16 %v205, %v204
    %v216 = vpack.c.b16 %v207, %v206
    %v217 = vpack.c.b16 %v209, %v208
    %226 = vmatprep.subr.bf16.mxu0 0
    %227 = vmatpush1.bf16.msra.mxu0 %v210
    %228 = vmatprep.subr.bf16.mxu0 0
    %229 = vmatpush1.bf16.msra.mxu0 %v211
    %230 = vmatprep.subr.bf16.mxu0 0
    %231 = vmatpush1.bf16.msra.mxu0 %v212
    %232 = vmatprep.subr.bf16.mxu0 0
    %233 = vmatpush1.bf16.msra.mxu0 %v213
    %234 = vmatprep.subr.bf16.mxu0 0
    %235 = vmatpush1.bf16.msra.mxu0 %v214
    %236 = vmatprep.subr.bf16.mxu0 0
    %237 = vmatpush1.bf16.msra.mxu0 %v215
    %238 = vmatprep.subr.bf16.mxu0 0
    %239 = vmatpush1.bf16.msra.mxu0 %v216
    %240 = vmatprep.subr.bf16.mxu0 0
    %241 = vmatpush1.bf16.msra.mxu0 %v217
    %242 = vmatprep.subr.bf16.mxu0 0
    %243 = vmatpush1.bf16.msra.mxu0 0
    %244 = vmatprep.subr.bf16.mxu0 0
    %245 = vmatpush1.bf16.msra.mxu0 0
    %246 = vmatprep.subr.bf16.mxu0 0
    %247 = vmatpush1.bf16.msra.mxu0 0
    %248 = vmatprep.subr.bf16.mxu0 0
    %249 = vmatpush1.bf16.msra.mxu0 0
    %250 = vmatprep.subr.bf16.mxu0 0
    %251 = vmatpush1.bf16.msra.mxu0 0
    %252 = vmatprep.subr.bf16.mxu0 0
    %253 = vmatpush1.bf16.msra.mxu0 0
    %254 = vmatprep.subr.bf16.mxu0 0
    %255 = vmatpush1.bf16.msra.mxu0 0
    %256 = vmatprep.subr.bf16.mxu0 0
    %257 = vmatpush1.bf16.msra.mxu0 0
    %258 = vmatprep.mubr.bf16.mxu0 0
    %259 = vmatmul.mubr.bf16.gmra.mrb[0].mxu0 %v154
    %v260 = vpop.f32.mrb[0].mxu0
    %v261 = vadd.f32 %v176, %v260
    %v262 = vpop.f32.mrb[0].mxu0
    %v263 = vpop.f32.mrb[0].mxu0
    %v264 = vadd.f32 %v176, %v263
    %v265 = vpop.f32.mrb[0].mxu0
    %266 = vdwg.mxu0
    %267 = vst.msk [vmem:[#allocation2] sm:$0xff] %vm30, %v261
    %268 = vst.msk [vmem:[#allocation2 + $0x8] sm:$0xff] %vm30, %v264
    // Predicated region
    $region30: #{tpu_custom_call.1} parent=1 // pred_check
      _
    $region31: #{tpu_custom_call.1} parent=1 // pred_check_branch
      %270 = sbr.rel (0) target = $region33
    $region32: #{tpu_custom_call.1} parent=1 // pred_region
      %s272 = ssub.s32 256, 256
      %273 = vsyncadd [#allocation3], %s272
      %s274 = sshll.u32 [#allocation2], 4
      %s275 = int_to_ptr.vmem [resolvable:$true] %s274
      %280 = dma.vmem_to_hbm [thread:$0]  %s275, 256, %s7, [#allocation3], 128, 128, 8
    $region33: #{tpu_custom_call.1} parent=1 // pred_fallthru
      _
    // Predicated region
    $region34: #{tpu_custom_call.1} parent=1 // pred_check
      _
    $region35: #{tpu_custom_call.1} parent=1 // pred_check_branch
      %282 = sbr.rel (0) target = $region37
    $region36: #{tpu_custom_call.1} parent=1 // pred_region
      %283 = dma.done [#allocation3], 256
    $region37: #{tpu_custom_call.1} parent=1 // pred_fallthru
      _
    %284 = vsyncpa [#allocation3], 1

</llo_original>
